<compile_context>
chip_gen: v7x
topology: tpu7x:2x2x1
jax: 0.10.0
libtpu: 0.0.40
codegen_flags: <defaults>
</compile_context>

<pallas_src>
import math

import jax
import jax.numpy as jnp
from jax.experimental import pallas as pl
from jax.experimental.pallas import tpu as pltpu


def _bilinear_matrix(out_size: int, in_size: int) -> jnp.ndarray:
    """(out_size, in_size) matrix implementing 1-D bilinear interpolation with
    align_corners=True (PyTorch nn.Upsample semantics)."""
    if in_size == 1:
        return jnp.ones((out_size, 1), dtype=jnp.float32)
    if out_size == 1:
        m = jnp.zeros((1, in_size), dtype=jnp.float32)
        return m.at[0, 0].set(1.0)
    i = jnp.arange(out_size, dtype=jnp.float32)
    src = i * (in_size - 1) / (out_size - 1)
    i0 = jnp.clip(jnp.floor(src).astype(jnp.int32), 0, in_size - 2)
    frac = src - i0.astype(jnp.float32)
    rows = jnp.arange(out_size)
    m = jnp.zeros((out_size, in_size), dtype=jnp.float32)
    m = m.at[rows, i0].add(1.0 - frac)
    m = m.at[rows, i0 + 1].add(frac)
    return m


def _round_down(x: int, m: int) -> int:
    return (x // m) * m


def _pick_tiles(cp: int, hw: int, itemsize: int, tile_budget: int):
    """(channel_tile, spatial_tile) for the elementwise gating pass.

    * spatial tile is a multiple of 128 lanes (or the full extent if smaller),
      capped so that even a minimum-height channel tile fits the byte budget.
    * channel tile alignment is dtype-aware (8 rows f32, 16 bf16, 32 int8/fp8).
    * no divisibility requirement: ragged edge blocks are masked by Pallas.
    """
    align_s = 128
    align_c = max(8, 32 // itemsize)
    max_ts = max(align_s,
                 _round_down(tile_budget // (align_c * itemsize), align_s))
    ts = hw if hw <= max_ts else max_ts
    max_tc = max(align_c, _round_down(tile_budget // (ts * itemsize), align_c))
    tc = cp if cp <= max_tc else max_tc
    return tc, ts


def _gate_kernel(next_ref, mh_ref, uwt_ref, uh_ref, b_ref, gate_ref):
    # next_ref: (1, C*h, w)  low-res features, (channel, row)-major rows
    # mh_ref  : (h, C*h)     kron(conv_weight, I_h)  (conv folded), f32
    # uwt_ref : (w, W)       Uw^T (bilinear, align_corners=True), f32
    # uh_ref  : (H, h)       Uh, f32
    # b_ref   : (1, 1) SMEM  conv bias
    # gate_ref: (1, H, W)    sigmoid gate, emitted in prev_feats.dtype
    nxt = next_ref[0].astype(jnp.float32)                              # (C*h, w)
    g = jnp.dot(mh_ref[...], nxt, preferred_element_type=jnp.float32)  # (h, w)
    t = jnp.dot(g, uwt_ref[...], preferred_element_type=jnp.float32)   # (h, W)
    up = jnp.dot(uh_ref[...], t, preferred_element_type=jnp.float32)   # (H, W)
    gate_ref[0] = jax.nn.sigmoid(up + b_ref[0, 0]).astype(gate_ref.dtype)


def _gating_kernel(gate_ref, prev_ref, pruned_ref, es_ref):
    # gate_ref : (1, 1, ts)   gate slice (same dtype as prev)
    # prev_ref : (1, tc, ts)  high-res features
    prev = prev_ref[0]                                   # (tc, ts)
    gate = gate_ref[0]                                   # (1, ts) broadcasts
    es_ref[0] = prev * gate
    pruned_ref[0] = prev * (1.0 - gate)


def ne_module_forward(prev_feats, next_feats, gate_w, gate_b, up_factor=4):
    """prev_feats: (N, Cp, H, W); next_feats: (N, C, h, w) with H = up*h."""
    N, Cp, H, W = prev_feats.shape
    Nn, C, h, w = next_feats.shape
    assert N == Nn and H == up_factor * h and W == up_factor * w

    HW = H * W
    itemsize = jnp.dtype(prev_feats.dtype).itemsize

    # ---- gate kernel: conv1x1 + separable bilinear upsample + sigmoid -------
    # conv-then-upsample == upsample-then-conv exactly (both linear, conv is
    # pointwise); bias is added after the upsample so no row-stochasticity
    # assumption is needed.
    wvec = gate_w.reshape(1, C).astype(jnp.float32)
    mh = jnp.kron(wvec, jnp.eye(h, dtype=jnp.float32))        # (h, C*h)
    uh = _bilinear_matrix(H, h)                               # (H, h)
    uwt = _bilinear_matrix(W, w).T                            # (w, W)
    b2d = gate_b.reshape(1, 1).astype(jnp.float32)
    next_r = next_feats.reshape(N, C * h, w)                  # contiguous (free)

    gate = pl.pallas_call(
        _gate_kernel,
        out_shape=jax.ShapeDtypeStruct((N, H, W), prev_feats.dtype),
        grid_spec=pltpu.PrefetchScalarGridSpec(
            num_scalar_prefetch=0,
            grid=(N,),
            in_specs=[
                pl.BlockSpec((1, C * h, w), lambda n: (n, 0, 0)),
                pl.BlockSpec((h, C * h), lambda n: (0, 0)),
                pl.BlockSpec((w, W), lambda n: (0, 0)),
                pl.BlockSpec((H, h), lambda n: (0, 0)),
                pl.BlockSpec(memory_space=pltpu.MemorySpace.SMEM),
            ],
            out_specs=pl.BlockSpec((1, H, W), lambda n: (n, 0, 0)),
        ),
        compiler_params=pltpu.CompilerParams(
            dimension_semantics=("parallel",),
            vmem_limit_bytes=32 * 1024 * 1024),
        cost_estimate=pl.CostEstimate(
            flops=2 * N * (h * (C * h) * w + h * w * W + H * h * W),
            transcendentals=N * HW,
            bytes_accessed=N * (C * h * w + HW) * itemsize
                           + (h * C * h + w * W + H * h + 1) * 4),
    )(next_r, mh, uwt, uh, b2d)

    # ---- lane-dense, tiled elementwise gating pass ---------------------------
    gate_flat = gate.reshape(N, 1, HW)                        # contiguous (free)
    prev_flat = prev_feats.reshape(N, Cp, HW)                 # contiguous (free)

    # ~2 MiB per (tc, ts) tile; 3 tiled arrays x 2 buffers ~= 12 MiB (+ tiny
    # gate tiles) -> safe against v7x's 64 MiB physical VMEM / 32 MiB scoped.
    tile_budget = 2 << 20
    tc, ts = _pick_tiles(Cp, HW, itemsize, tile_budget)
    # Channel axis innermost so the (1,1,ts) gate block index is constant
    # across the inner loop (no redundant gate re-DMA).  All axes parallel for
    # megacore sharding (N and HW_tiles give v7x's 2 TCs work even if Cp is
    # a single tile).
    grid = (N, pl.cdiv(HW, ts), pl.cdiv(Cp, tc))

    pruned, es = pl.pallas_call(
        _gating_kernel,
        out_shape=(
            jax.ShapeDtypeStruct((N, Cp, HW), prev_feats.dtype),   # pruned
            jax.ShapeDtypeStruct((N, Cp, HW), prev_feats.dtype),   # es
        ),
        grid_spec=pltpu.PrefetchScalarGridSpec(
            num_scalar_prefetch=0,
            grid=grid,
            in_specs=[
                pl.BlockSpec((1, 1, ts), lambda n, s, c: (n, 0, s)),
                pl.BlockSpec((1, tc, ts), lambda n, s, c: (n, c, s)),
            ],
            out_specs=[
                pl.BlockSpec((1, tc, ts), lambda n, s, c: (n, c, s)),
                pl.BlockSpec((1, tc, ts), lambda n, s, c: (n, c, s)),
            ],
        ),
        compiler_params=pltpu.CompilerParams(
            dimension_semantics=("parallel", "parallel", "parallel"),
            vmem_limit_bytes=32 * 1024 * 1024),
        cost_estimate=pl.CostEstimate(
            flops=3 * N * Cp * HW,
            transcendentals=0,
            bytes_accessed=3 * N * Cp * HW * itemsize + N * HW * itemsize),
    )(gate_flat, prev_flat)

    return pruned.reshape(N, Cp, H, W), es.reshape(N, Cp, H, W)


def _reference(prev_feats, next_feats, gate_w, gate_b, up_factor=4):
    # Pure-JAX reference mirroring the PyTorch order: upsample -> conv -> sigmoid.
    N, C, h, w = next_feats.shape
    H, W = up_factor * h, up_factor * w
    uh = _bilinear_matrix(H, h)
    uw = _bilinear_matrix(W, w)
    up = jnp.einsum('Hh,nchw,Ww->ncHW', uh, next_feats, uw)
    g = jnp.einsum('c,ncHW->nHW', gate_w.reshape(-1), up) + gate_b.reshape(())
    gate = jax.nn.sigmoid(g)[:, None, :, :]
    es = prev_feats * gate
    return prev_feats - es, es


if __name__ == "__main__":
    # Small shapes consistent with the module: internal_channels (C) = 32,
    # up_factor = 4, low-res spatial 4x4 -> high-res 16x16, prev channels = 32.
    key = jax.random.PRNGKey(0)
    k1, k2, k3, k4 = jax.random.split(key, 4)

    N, C, Cp = 2, 32, 32
    h = w = 4
    up = 4
    H, W = up * h, up * w

    next_feats = jax.random.normal(k1, (N, C, h, w), dtype=jnp.float32)
    prev_feats = jax.random.normal(k2, (N, Cp, H, W), dtype=jnp.float32)

    # gate_conv: Conv2d(C, 1, kernel_size=1) with xavier_normal_ weights.
    std = math.sqrt(2.0 / (C + 1))
    gate_w = std * jax.random.normal(k3, (1, C, 1, 1), dtype=jnp.float32)
    bound = 1.0 / math.sqrt(C)  # PyTorch default Conv2d bias init range
    gate_b = jax.random.uniform(k4, (1,), minval=-bound, maxval=bound,
                                dtype=jnp.float32)

    pruned, es = ne_module_forward(prev_feats, next_feats, gate_w, gate_b, up)
    jax.block_until_ready((pruned, es))

    pruned_ref, es_ref = _reference(prev_feats, next_feats, gate_w, gate_b, up)
    assert jnp.allclose(pruned, pruned_ref, atol=1e-5, rtol=1e-5)
    assert jnp.allclose(es, es_ref, atol=1e-5, rtol=1e-5)
    # identity sanity: pruned + es == prev
    assert jnp.allclose(pruned + es, prev_feats, atol=1e-5, rtol=1e-5)

    print("KERNEL_OK")
</pallas_src>

<mosaic_0001>
module attributes {stable_mosaic.version = 11 : i64} {
  func.func @_gate_kernel(%arg0: i32, %arg1: memref<1x128x4xf32, #tpu.memory_space<vmem>>, %arg2: memref<4x128xf32, #tpu.memory_space<vmem>>, %arg3: memref<4x16xf32, #tpu.memory_space<vmem>>, %arg4: memref<16x4xf32, #tpu.memory_space<vmem>>, %arg5: memref<1x1xf32, #tpu.memory_space<smem>>, %arg6: memref<1x16x16xf32, #tpu.memory_space<vmem>>) attributes {dimension_semantics = [#tpu.dimension_semantics<parallel>], iteration_bounds = array<i64: 2>, scalar_prefetch = 0 : i64, scratch_operands = 0 : i64, tpu.core_type = #tpu.core_type<tc>, window_params = [{transform_indices = @transform_0, window_bounds = array<i64: 1, 128, 4>}, {pipeline_mode = #tpu.pipeline_mode<synchronous>, transform_indices = @transform_1, window_bounds = array<i64: 4, 128>}, {pipeline_mode = #tpu.pipeline_mode<synchronous>, transform_indices = @transform_2, window_bounds = array<i64: 4, 16>}, {pipeline_mode = #tpu.pipeline_mode<synchronous>, transform_indices = @transform_3, window_bounds = array<i64: 16, 4>}, {transform_indices = @transform_4, window_bounds = array<i64: 1, 1>}, {transform_indices = @transform_5, window_bounds = array<i64: 1, 16, 16>}]} {
    %c0 = arith.constant 0 : index
    %c0_0 = arith.constant 0 : index
    %c0_1 = arith.constant 0 : index
    %0 = vector.load %arg1[%c0, %c0_0, %c0_1] : memref<1x128x4xf32, #tpu.memory_space<vmem>>, vector<1x128x4xf32>
    %1 = vector.shape_cast %0 : vector<1x128x4xf32> to vector<128x4xf32>
    %c0_2 = arith.constant 0 : index
    %c0_3 = arith.constant 0 : index
    %2 = vector.load %arg2[%c0_2, %c0_3] : memref<4x128xf32, #tpu.memory_space<vmem>>, vector<4x128xf32>
    %cst = arith.constant dense<0.000000e+00> : vector<4x4xf32>
    %3 = tpu.matmul %2, %1, %cst {dimension_numbers = #tpu.dot_dimension_numbers<[1], [0], [0], [1], [0, 0, 1, 1], [], []>} : vector<4x128xf32>, vector<128x4xf32>, vector<4x4xf32> -> vector<4x4xf32>
    %c0_4 = arith.constant 0 : index
    %c0_5 = arith.constant 0 : index
    %4 = vector.load %arg3[%c0_4, %c0_5] : memref<4x16xf32, #tpu.memory_space<vmem>>, vector<4x16xf32>
    %cst_6 = arith.constant dense<0.000000e+00> : vector<4x16xf32>
    %5 = tpu.matmul %3, %4, %cst_6 {dimension_numbers = #tpu.dot_dimension_numbers<[1], [0], [0], [1], [0, 0, 1, 1], [], []>} : vector<4x4xf32>, vector<4x16xf32>, vector<4x16xf32> -> vector<4x16xf32>
    %c0_7 = arith.constant 0 : index
    %c0_8 = arith.constant 0 : index
    %6 = vector.load %arg4[%c0_7, %c0_8] : memref<16x4xf32, #tpu.memory_space<vmem>>, vector<16x4xf32>
    %cst_9 = arith.constant dense<0.000000e+00> : vector<16x16xf32>
    %7 = tpu.matmul %6, %5, %cst_9 {dimension_numbers = #tpu.dot_dimension_numbers<[1], [0], [0], [1], [0, 0, 1, 1], [], []>} : vector<16x4xf32>, vector<4x16xf32>, vector<16x16xf32> -> vector<16x16xf32>
    %c0_10 = arith.constant 0 : index
    %c0_11 = arith.constant 0 : index
    %8 = memref.load %arg5[%c0_10, %c0_11] : memref<1x1xf32, #tpu.memory_space<smem>>
    %9 = vector.broadcast %8 : f32 to vector<16x16xf32>
    %10 = arith.addf %7, %9 : vector<16x16xf32>
    %11 = arith.negf %10 : vector<16x16xf32>
    %12 = math.exp %11 : vector<16x16xf32>
    %cst_12 = arith.constant 1.000000e+00 : f32
    %13 = vector.broadcast %cst_12 : f32 to vector<16x16xf32>
    %14 = arith.addf %13, %12 : vector<16x16xf32>
    %15 = arith.divf %13, %14 : vector<16x16xf32>
    %c0_13 = arith.constant 0 : index
    %c0_14 = arith.constant 0 : index
    %c0_15 = arith.constant 0 : index
    %16 = vector.load %arg6[%c0_13, %c0_14, %c0_15] : memref<1x16x16xf32, #tpu.memory_space<vmem>>, vector<1x16x16xf32>
    %17 = vector.shape_cast %16 : vector<1x16x16xf32> to vector<16x16xf32>
    %18 = vector.shape_cast %15 : vector<16x16xf32> to vector<1x16x16xf32>
    tpu.vector_store %arg6[%c0_13, %c0_14, %c0_15], %18 {strides = array<i32>} : memref<1x16x16xf32, #tpu.memory_space<vmem>>, vector<1x16x16xf32>,
    return
  }
  func.func @transform_0(%arg0: i32) -> (i32, i32, i32) {
    %c0_i32 = arith.constant 0 : i32
    %c0_i32_0 = arith.constant 0 : i32
    %c0_i32_1 = arith.constant 0 : i32
    return %arg0, %c0_i32, %c0_i32_0 : i32, i32, i32
  }
  func.func @transform_1(%arg0: i32) -> (i32, i32) {
    %c0_i32 = arith.constant 0 : i32
    %c0_i32_0 = arith.constant 0 : i32
    %c0_i32_1 = arith.constant 0 : i32
    return %c0_i32, %c0_i32_0 : i32, i32
  }
  func.func @transform_2(%arg0: i32) -> (i32, i32) {
    %c0_i32 = arith.constant 0 : i32
    %c0_i32_0 = arith.constant 0 : i32
    %c0_i32_1 = arith.constant 0 : i32
    return %c0_i32, %c0_i32_0 : i32, i32
  }
  func.func @transform_3(%arg0: i32) -> (i32, i32) {
    %c0_i32 = arith.constant 0 : i32
    %c0_i32_0 = arith.constant 0 : i32
    %c0_i32_1 = arith.constant 0 : i32
    return %c0_i32, %c0_i32_0 : i32, i32
  }
  func.func @transform_4(%arg0: i32) -> (i32, i32) {
    %c0_i32 = arith.constant 0 : i32
    %c0_i32_0 = arith.constant 0 : i32
    %c0_i32_1 = arith.constant 0 : i32
    return %c0_i32, %c0_i32_0 : i32, i32
  }
  func.func @transform_5(%arg0: i32) -> (i32, i32, i32) {
    %c0_i32 = arith.constant 0 : i32
    %c0_i32_0 = arith.constant 0 : i32
    %c0_i32_1 = arith.constant 0 : i32
    return %arg0, %c0_i32, %c0_i32_0 : i32, i32, i32
  }
}

</mosaic_0001>

<llo_original>
// kernel: tpu_custom_call.1
$region0: #{tpu_custom_call.1}
  #allocation0 [shape = 'u32[]', space=smem, size = 0x4, offset = 0x4, fixed_abs, tag = 'smem constant byte address 0x4 - core index']
  #allocation1 [shape = 'u32[144,128]{1,0:T(1,128)}', space=vmem, size = 0x12000, scoped, tag = 'internal scratch']
  #allocation2 [shape = 'f32[1,1]{1,0:T(1,128)S(6)}', space=smem, size = 0x200, scoped, tag = 'scoped memory for tpu_custom_call.1']
  %s0 = inlined_call_operand.vmem [shape: f32[2,128,4], index: 0, kind: input, shape index: {}]
  %s1 = inlined_call_operand.vmem [shape: f32[4,128], index: 1, kind: input, shape index: {}]
  %s2 = inlined_call_operand.vmem [shape: f32[4,16], index: 2, kind: input, shape index: {}]
  %s3 = inlined_call_operand.vmem [shape: f32[16,4], index: 3, kind: input, shape index: {}]
  %s4 = inlined_call_operand.<no memory space> [shape: f32[1,1], index: 4, kind: input, shape index: {}]
  %s5 = inlined_call_operand.hbm [shape: f32[2,16,16], index: 5, kind: output, shape index: {}]
  %s6 = sld [smem:[#allocation0]]
  $region53: #{tpu_custom_call.1} parent=0
    _
  %s8 = ssub.s32 1, %s6
  %s9 = scalar_select 0, %s8, %s6
  %10 = sst [smem:[#allocation2]] %s4
  $region1: #{tpu_custom_call.1} parent=0
    #allocation3 [shape = 'u8[16384]{0}', space=vmem, size = 0x4000, scoped, tag = 'output window, operand 0']
    #allocation4 [shape = 's32[2]{0}', space=sflag, size = 0x8, scoped, tag = 'scoped memory for tpu_custom_call.1']
    %11 = vsyncpa [#allocation4], 0
    %s12 = scalar_lea.sflag [#allocation4], 1
    %13 = vsyncpa %s12, 0
    loop: start=0, step=1, limit=4
    $region2: #{tpu_custom_call.1} parent=1 // loop_pre_header
      _
    $region3: #{tpu_custom_call.1} parent=1 // loop_header
      %s15 = sphi 0, %s19
      %p16 = scmp.ge.s32.totalorder %s15, 4
      %s25 = sphi 0, %s27
      %s28 = sphi 0, %s25
      %s29 = sphi 0, %s28
      %s45 = sphi 0, %s29
      %s49 = sphi 0, %s49
      %s51 = sphi 0, %s49
      %s52 = sphi 0, %s51
      %s66 = sphi 0, %s52
      %s70 = sphi 0, %s70
      %s72 = sphi 0, %s70
      %s73 = sphi 0, %s72
      %s87 = sphi 0, %s73
      %s91 = sphi 0, %s91
      %s93 = sphi 0, %s91
      %s94 = sphi 0, %s93
      %s108 = sphi 0, %s94
      %s112 = sphi 0, %s112
      %s114 = sphi 0, %s112
      %s115 = sphi 0, %s114
      %s129 = sphi 0, %s115
      %s135 = sphi 0, %s137
      %s138 = sphi 0, %s135
      %s139 = sphi 0, %s138
      %s155 = sphi 0, %s139
    $region4: #{tpu_custom_call.1} parent=1 // loop_header_branch
      %18 = sbr.rel (%p16) target = $region8
    $region5: #{tpu_custom_call.1} parent=1 // loop_body
      %s20 = ssub.s32 %s15, 1
      %s21 = ssub.s32 %s15, 2
      %s22 = sadd.s32 %s15, 1
      %s23 = ssub.s32 %s15, %s22
      %p24 = scmp.eq.s32.totalorder %s23, 0
      %s26 = sadd.s32 %s25, 1
      %s27 = scalar_select %p24, %s25, %s26
      %p30 = pneg %p24
      %p31 = scmp.eq.s32.totalorder %s15, 1
      %p32 = por %p30, %p31
      %p33 = scmp.ne.s32.totalorder %s25, %s28
      %p34 = scmp.eq.s32.totalorder %s15, 0
      %p35 = por %p33, %p34
      %p36 = scmp.ne.s32.totalorder %s25, %s28
      %p37 = scmp.eq.s32.totalorder %s20, 1
      %p38 = por %p36, %p37
      %p39 = scmp.ne.s32.totalorder %s28, %s29
      %p40 = scmp.eq.s32.totalorder %s20, 0
      %p41 = por %p39, %p40
      %p42 = scmp.ne.s32.totalorder %s28, %s29
      %p43 = scmp.eq.s32.totalorder %s21, 1
      %p44 = por %p42, %p43
      %p46 = scmp.ne.s32.totalorder %s29, %s45
      %p47 = scmp.eq.s32.totalorder %s21, 0
      %p48 = por %p46, %p47
      %s50 = sadd.s32 %s49, 1
      %p53 = scmp.eq.s32.totalorder %s15, 1
      %p54 = scmp.ne.s32.totalorder %s49, %s51
      %p55 = scmp.eq.s32.totalorder %s15, 0
      %p56 = por %p54, %p55
      %p57 = scmp.ne.s32.totalorder %s49, %s51
      %p58 = scmp.eq.s32.totalorder %s20, 1
      %p59 = por %p57, %p58
      %p60 = scmp.ne.s32.totalorder %s51, %s52
      %p61 = scmp.eq.s32.totalorder %s20, 0
      %p62 = por %p60, %p61
      %p63 = scmp.ne.s32.totalorder %s51, %s52
      %p64 = scmp.eq.s32.totalorder %s21, 1
      %p65 = por %p63, %p64
      %p67 = scmp.ne.s32.totalorder %s52, %s66
      %p68 = scmp.eq.s32.totalorder %s21, 0
      %p69 = por %p67, %p68
      %s71 = sadd.s32 %s70, 1
      %p74 = scmp.eq.s32.totalorder %s15, 1
      %p75 = scmp.ne.s32.totalorder %s70, %s72
      %p76 = scmp.eq.s32.totalorder %s15, 0
      %p77 = por %p75, %p76
      %p78 = scmp.ne.s32.totalorder %s70, %s72
      %p79 = scmp.eq.s32.totalorder %s20, 1
      %p80 = por %p78, %p79
      %p81 = scmp.ne.s32.totalorder %s72, %s73
      %p82 = scmp.eq.s32.totalorder %s20, 0
      %p83 = por %p81, %p82
      %p84 = scmp.ne.s32.totalorder %s72, %s73
      %p85 = scmp.eq.s32.totalorder %s21, 1
      %p86 = por %p84, %p85
      %p88 = scmp.ne.s32.totalorder %s73, %s87
      %p89 = scmp.eq.s32.totalorder %s21, 0
      %p90 = por %p88, %p89
      %s92 = sadd.s32 %s91, 1
      %p95 = scmp.eq.s32.totalorder %s15, 1
      %p96 = scmp.ne.s32.totalorder %s91, %s93
      %p97 = scmp.eq.s32.totalorder %s15, 0
      %p98 = por %p96, %p97
      %p99 = scmp.ne.s32.totalorder %s91, %s93
      %p100 = scmp.eq.s32.totalorder %s20, 1
      %p101 = por %p99, %p100
      %p102 = scmp.ne.s32.totalorder %s93, %s94
      %p103 = scmp.eq.s32.totalorder %s20, 0
      %p104 = por %p102, %p103
      %p105 = scmp.ne.s32.totalorder %s93, %s94
      %p106 = scmp.eq.s32.totalorder %s21, 1
      %p107 = por %p105, %p106
      %p109 = scmp.ne.s32.totalorder %s94, %s108
      %p110 = scmp.eq.s32.totalorder %s21, 0
      %p111 = por %p109, %p110
      %s113 = sadd.s32 %s112, 1
      %p116 = scmp.eq.s32.totalorder %s15, 1
      %p117 = scmp.ne.s32.totalorder %s112, %s114
      %p118 = scmp.eq.s32.totalorder %s15, 0
      %p119 = por %p117, %p118
      %p120 = scmp.ne.s32.totalorder %s112, %s114
      %p121 = scmp.eq.s32.totalorder %s20, 1
      %p122 = por %p120, %p121
      %p123 = scmp.ne.s32.totalorder %s114, %s115
      %p124 = scmp.eq.s32.totalorder %s20, 0
      %p125 = por %p123, %p124
      %p126 = scmp.ne.s32.totalorder %s114, %s115
      %p127 = scmp.eq.s32.totalorder %s21, 1
      %p128 = por %p126, %p127
      %p130 = scmp.ne.s32.totalorder %s115, %s129
      %p131 = scmp.eq.s32.totalorder %s21, 0
      %p132 = por %p130, %p131
      %s133 = ssub.s32 %s15, %s22
      %p134 = scmp.eq.s32.totalorder %s133, 0
      %s136 = sadd.s32 %s135, 1
      %s137 = scalar_select %p134, %s135, %s136
      %p140 = pneg %p134
      %p141 = scmp.eq.s32.totalorder %s15, 1
      %p142 = por %p140, %p141
      %p143 = scmp.ne.s32.totalorder %s135, %s138
      %p144 = scmp.eq.s32.totalorder %s15, 0
      %p145 = por %p143, %p144
      %p146 = scmp.ne.s32.totalorder %s135, %s138
      %p147 = scmp.eq.s32.totalorder %s20, 1
      %p148 = por %p146, %p147
      %p149 = scmp.ne.s32.totalorder %s138, %s139
      %p150 = scmp.eq.s32.totalorder %s20, 0
      %p151 = por %p149, %p150
      %p152 = scmp.ne.s32.totalorder %s138, %s139
      %p153 = scmp.eq.s32.totalorder %s21, 1
      %p154 = por %p152, %p153
      %p156 = scmp.ne.s32.totalorder %s139, %s155
      %p157 = scmp.eq.s32.totalorder %s21, 0
      %p158 = por %p156, %p157
      %p159 = scmp.le.s32.totalorder 1, %s15
      %p160 = scmp.lt.s32.totalorder %s15, 3
      %p161 = pnand %p159, %p160
      %p162 = pneg %p161
      // Predicated region
      $region9: #{tpu_custom_call.1} parent=5 // pred_check
        _
      $region10: #{tpu_custom_call.1} parent=5 // pred_check_branch
        %164 = sbr.rel (%p161) target = $region12
      $region11: #{tpu_custom_call.1} parent=5 // pred_region
        %s165 = ssub.s32 %s15, 1
        // Predicated region
        $region13: #{tpu_custom_call.1} parent=11 // pred_check
          %p166 = pneg %p62
        $region14: #{tpu_custom_call.1} parent=11 // pred_check_branch
          %168 = sbr.rel (%p166) target = $region16
        $region15: #{tpu_custom_call.1} parent=11 // pred_region
          _
        $region16: #{tpu_custom_call.1} parent=11 // pred_fallthru
          _
        // Predicated region
        $region17: #{tpu_custom_call.1} parent=11 // pred_check
          %p169 = pneg %p83
        $region18: #{tpu_custom_call.1} parent=11 // pred_check_branch
          %171 = sbr.rel (%p169) target = $region20
        $region19: #{tpu_custom_call.1} parent=11 // pred_region
          _
        $region20: #{tpu_custom_call.1} parent=11 // pred_fallthru
          _
        // Predicated region
        $region21: #{tpu_custom_call.1} parent=11 // pred_check
          %p172 = pneg %p104
        $region22: #{tpu_custom_call.1} parent=11 // pred_check_branch
          %174 = sbr.rel (%p172) target = $region24
        $region23: #{tpu_custom_call.1} parent=11 // pred_region
          _
        $region24: #{tpu_custom_call.1} parent=11 // pred_fallthru
          _
        // Predicated region
        $region25: #{tpu_custom_call.1} parent=11 // pred_check
          %p175 = pneg %p125
        $region26: #{tpu_custom_call.1} parent=11 // pred_check_branch
          %177 = sbr.rel (%p175) target = $region28
        $region27: #{tpu_custom_call.1} parent=11 // pred_region
          _
        $region28: #{tpu_custom_call.1} parent=11 // pred_fallthru
          _
      $region12: #{tpu_custom_call.1} parent=5 // pred_fallthru
        _
      %p178 = scmp.lt.s32.totalorder %s15, 2
      // Predicated region
      $region29: #{tpu_custom_call.1} parent=5 // pred_check
        %p179 = pneg %p178
      $region30: #{tpu_custom_call.1} parent=5 // pred_check_branch
        %181 = sbr.rel (%p179) target = $region32
      $region31: #{tpu_custom_call.1} parent=5 // pred_region
        // Predicated region
        $region33: #{tpu_custom_call.1} parent=31 // pred_check
          %p182 = pneg %p35
        $region34: #{tpu_custom_call.1} parent=31 // pred_check_branch
          %184 = sbr.rel (%p182) target = $region36
        $region35: #{tpu_custom_call.1} parent=31 // pred_region
          %p185 = scmp.lt.s32.totalorder %s15, 1
          %s186 = scalar_select %p185, %s15, 1
          %s187 = smul.addr %s186, 16
          %s188 = smul.addr %s187, 8
          %s189 = scalar_lea.vmem %s0, %s188
        $region36: #{tpu_custom_call.1} parent=31 // pred_fallthru
          _
      $region32: #{tpu_custom_call.1} parent=5 // pred_fallthru
        _
      %p190 = scmp.le.s32.totalorder 1, %s15
      %p191 = scmp.lt.s32.totalorder %s15, 3
      %p192 = pnand %p190, %p191
      %p193 = pneg %p192
      // Predicated region
      $region37: #{tpu_custom_call.1} parent=5 // pred_check
        _
      $region38: #{tpu_custom_call.1} parent=5 // pred_check_branch
        %195 = sbr.rel (%p192) target = $region40
      $region39: #{tpu_custom_call.1} parent=5 // pred_region
        %s196 = ssub.s32 %s15, 1
        %p197 = scmp.lt.s32.totalorder %s20, 1
        %s198 = scalar_select %p197, %s20, 1
        %s199 = smul.addr %s198, 16
        %s200 = smul.addr %s199, 8
        %s201 = scalar_lea.vmem %s0, %s200
        %p202 = pneg %p41
        %p203 = pneg %p38
        %p204 = pneg %p62
        %p205 = pneg %p59
        %p206 = pneg %p83
        %p207 = pneg %p80
        %p208 = pneg %p104
        %p209 = pneg %p101
        %p210 = pneg %p125
        %p211 = pneg %p122
        %p212 = pneg %p151
        %p213 = pneg %p148
        %s214 = sand.u32 %s138, 1
        %s215 = scalar_lea.sflag [#allocation4], %s214
        %s216 = sand.u32 %s138, 1
        %s217 = smul.addr %s216, 16
        %s218 = scalar_lea.vmem [#allocation3], %s217
        %p219 = scmp.lt.s32.totalorder %s20, 1
        %s220 = scalar_select %p219, %s20, 1
        %s221 = smul.addr %s220, 16
        %s222 = smul.addr %s221, 8
        %s223 = scalar_lea.vmem %s0, %s222
        %v224 = vld [vmem:[%s223] sm:$0xff]
        %v225 = vld [vmem:[%s223 + $0x8] sm:$0xff]
        %v226 = vld [vmem:[%s223 + $0x10] sm:$0xff]
        %v227 = vld [vmem:[%s223 + $0x18] sm:$0xff]
        %v228 = vld [vmem:[%s223 + $0x20] sm:$0xff]
        %v229 = vld [vmem:[%s223 + $0x28] sm:$0xff]
        %v230 = vld [vmem:[%s223 + $0x30] sm:$0xff]
        %v231 = vld [vmem:[%s223 + $0x38] sm:$0xff]
        %v232 = vld [vmem:[%s223 + $0x40] sm:$0xff]
        %v233 = vld [vmem:[%s223 + $0x48] sm:$0xff]
        %v234 = vld [vmem:[%s223 + $0x50] sm:$0xff]
        %v235 = vld [vmem:[%s223 + $0x58] sm:$0xff]
        %v236 = vld [vmem:[%s223 + $0x60] sm:$0xff]
        %v237 = vld [vmem:[%s223 + $0x68] sm:$0xff]
        %v238 = vld [vmem:[%s223 + $0x70] sm:$0xff]
        %v239 = vld [vmem:[%s223 + $0x78] sm:$0xff]
        %v240 = vld [vmem:[%s1] sm:$0xf]
        %241 = vmatprep.subr.mxu0 0.0
        %242 = vmatpush1.msra.mxu0 %v224
        %243 = vmatprep.subr.mxu0 0.0
        %244 = vmatpush1.msra.mxu0 %v225
        %245 = vmatprep.subr.mxu0 0.0
        %246 = vmatpush1.msra.mxu0 %v226
        %247 = vmatprep.subr.mxu0 0.0
        %248 = vmatpush1.msra.mxu0 %v227
        %249 = vmatprep.subr.mxu0 0.0
        %250 = vmatpush1.msra.mxu0 %v228
        %251 = vmatprep.subr.mxu0 0.0
        %252 = vmatpush1.msra.mxu0 %v229
        %253 = vmatprep.subr.mxu0 0.0
        %254 = vmatpush1.msra.mxu0 %v230
        %255 = vmatprep.subr.mxu0 0.0
        %256 = vmatpush1.msra.mxu0 %v231
        %257 = vmatprep.subr.mxu0 0.0
        %258 = vmatpush1.msra.mxu0 %v232
        %259 = vmatprep.subr.mxu0 0.0
        %260 = vmatpush1.msra.mxu0 %v233
        %261 = vmatprep.subr.mxu0 0.0
        %262 = vmatpush1.msra.mxu0 %v234
        %263 = vmatprep.subr.mxu0 0.0
        %264 = vmatpush1.msra.mxu0 %v235
        %265 = vmatprep.subr.mxu0 0.0
        %266 = vmatpush1.msra.mxu0 %v236
        %267 = vmatprep.subr.mxu0 0.0
        %268 = vmatpush1.msra.mxu0 %v237
        %269 = vmatprep.subr.mxu0 0.0
        %270 = vmatpush1.msra.mxu0 %v238
        %271 = vmatprep.subr.mxu0 0.0
        %272 = vmatpush1.msra.mxu0 %v239
        %273 = vmatprep.subr.mxu0 0.0
        %274 = vmatpush1.msra.mxu0 0.0
        %275 = vmatprep.subr.mxu0 0.0
        %276 = vmatpush1.msra.mxu0 0.0
        %277 = vmatprep.subr.mxu0 0.0
        %278 = vmatpush1.msra.mxu0 0.0
        %279 = vmatprep.subr.mxu0 0.0
        %280 = vmatpush1.msra.mxu0 0.0
        %281 = vmatprep.subr.mxu0 0.0
        %282 = vmatpush1.msra.mxu0 0.0
        %283 = vmatprep.subr.mxu0 0.0
        %284 = vmatpush1.msra.mxu0 0.0
        %285 = vmatprep.subr.mxu0 0.0
        %286 = vmatpush1.msra.mxu0 0.0
        %287 = vmatprep.subr.mxu0 0.0
        %288 = vmatpush1.msra.mxu0 0.0
        %289 = vmatprep.subr.mxu0 0.0
        %290 = vmatpush1.msra.mxu0 0.0
        %291 = vmatprep.subr.mxu0 0.0
        %292 = vmatpush1.msra.mxu0 0.0
        %293 = vmatprep.subr.mxu0 0.0
        %294 = vmatpush1.msra.mxu0 0.0
        %295 = vmatprep.subr.mxu0 0.0
        %296 = vmatpush1.msra.mxu0 0.0
        %297 = vmatprep.subr.mxu0 0.0
        %298 = vmatpush1.msra.mxu0 0.0
        %299 = vmatprep.subr.mxu0 0.0
        %300 = vmatpush1.msra.mxu0 0.0
        %301 = vmatprep.subr.mxu0 0.0
        %302 = vmatpush1.msra.mxu0 0.0
        %303 = vmatprep.subr.mxu0 0.0
        %304 = vmatpush1.msra.mxu0 0.0
        %305 = vmatprep.mubr.f32.mxu0 0.0
        %306 = vmatmul.mubr.f32.gmra.mrb[0].mxu0 %v240
        %v307 = vpop.f32.mrb[0].mxu0
        %v308 = vadd.f32 0.0, %v307
        %v309 = vpop.f32.mrb[0].mxu0
        %310 = vdwg.mxu0
        %v311 = vld [vmem:[%s2] sm:$0xf]
        %vm312 = vcmask 31744
        %v314 = vsel %vm312, %v308, 0
        %vm316 = vcmask 1043456
        %v318 = vsel %vm316, %v311, 0
        %320 = vmatprep.subr.mxu0 0.0
        %321 = vmatpush1.msra.mxu0 %v318
        %322 = vmatprep.subr.mxu0 0.0
        %323 = vmatpush1.msra.mxu0 0.0
        %324 = vmatprep.subr.mxu0 0.0
        %325 = vmatpush1.msra.mxu0 0.0
        %326 = vmatprep.subr.mxu0 0.0
        %327 = vmatpush1.msra.mxu0 0.0
        %328 = vmatprep.subr.mxu0 0.0
        %329 = vmatpush1.msra.mxu0 0.0
        %330 = vmatprep.subr.mxu0 0.0
        %331 = vmatpush1.msra.mxu0 0.0
        %332 = vmatprep.subr.mxu0 0.0
        %333 = vmatpush1.msra.mxu0 0.0
        %334 = vmatprep.subr.mxu0 0.0
        %335 = vmatpush1.msra.mxu0 0.0
        %336 = vmatprep.subr.mxu0 0.0
        %337 = vmatpush1.msra.mxu0 0.0
        %338 = vmatprep.subr.mxu0 0.0
        %339 = vmatpush1.msra.mxu0 0.0
        %340 = vmatprep.subr.mxu0 0.0
        %341 = vmatpush1.msra.mxu0 0.0
        %342 = vmatprep.subr.mxu0 0.0
        %343 = vmatpush1.msra.mxu0 0.0
        %344 = vmatprep.subr.mxu0 0.0
        %345 = vmatpush1.msra.mxu0 0.0
        %346 = vmatprep.subr.mxu0 0.0
        %347 = vmatpush1.msra.mxu0 0.0
        %348 = vmatprep.subr.mxu0 0.0
        %349 = vmatpush1.msra.mxu0 0.0
        %350 = vmatprep.subr.mxu0 0.0
        %351 = vmatpush1.msra.mxu0 0.0
        %352 = vmatprep.subr.mxu0 0.0
        %353 = vmatpush1.msra.mxu0 0.0
        %354 = vmatprep.subr.mxu0 0.0
        %355 = vmatpush1.msra.mxu0 0.0
        %356 = vmatprep.subr.mxu0 0.0
        %357 = vmatpush1.msra.mxu0 0.0
        %358 = vmatprep.subr.mxu0 0.0
        %359 = vmatpush1.msra.mxu0 0.0
        %360 = vmatprep.subr.mxu0 0.0
        %361 = vmatpush1.msra.mxu0 0.0
        %362 = vmatprep.subr.mxu0 0.0
        %363 = vmatpush1.msra.mxu0 0.0
        %364 = vmatprep.subr.mxu0 0.0
        %365 = vmatpush1.msra.mxu0 0.0
        %366 = vmatprep.subr.mxu0 0.0
        %367 = vmatpush1.msra.mxu0 0.0
        %368 = vmatprep.subr.mxu0 0.0
        %369 = vmatpush1.msra.mxu0 0.0
        %370 = vmatprep.subr.mxu0 0.0
        %371 = vmatpush1.msra.mxu0 0.0
        %372 = vmatprep.subr.mxu0 0.0
        %373 = vmatpush1.msra.mxu0 0.0
        %374 = vmatprep.subr.mxu0 0.0
        %375 = vmatpush1.msra.mxu0 0.0
        %376 = vmatprep.subr.mxu0 0.0
        %377 = vmatpush1.msra.mxu0 0.0
        %378 = vmatprep.subr.mxu0 0.0
        %379 = vmatpush1.msra.mxu0 0.0
        %380 = vmatprep.subr.mxu0 0.0
        %381 = vmatpush1.msra.mxu0 0.0
        %382 = vmatprep.subr.mxu0 0.0
        %383 = vmatpush1.msra.mxu0 0.0
        %384 = vmatprep.mubr.f32.mxu0 0.0
        %385 = vmatmul.mubr.f32.gmra.mrb[0].mxu0 %v314
        %v386 = vpop.f32.mrb[0].mxu0
        %v387 = vadd.f32 0.0, %v386
        %v388 = vpop.f32.mrb[0].mxu0
        %389 = vdwg.mxu0
        %v390 = vld [vmem:[%s3] sm:$0xff]
        %v391 = vld [vmem:[%s3 + $0x8] sm:$0xff]
        %s392 = sld [smem:[#allocation2]]
        %v393 = vstv %s392
        %v395 = vsel %vm312, %v390, 0
        %v398 = vsel %vm312, %v391, 0
        %v401 = vsel %vm316, %v387, 0
        %403 = vmatprep.subr.mxu0 0.0
        %404 = vmatpush1.msra.mxu0 %v401
        %405 = vmatprep.subr.mxu0 0.0
        %406 = vmatpush1.msra.mxu0 0.0
        %407 = vmatprep.subr.mxu0 0.0
        %408 = vmatpush1.msra.mxu0 0.0
        %409 = vmatprep.subr.mxu0 0.0
        %410 = vmatpush1.msra.mxu0 0.0
        %411 = vmatprep.subr.mxu0 0.0
        %412 = vmatpush1.msra.mxu0 0.0
        %413 = vmatprep.subr.mxu0 0.0
        %414 = vmatpush1.msra.mxu0 0.0
        %415 = vmatprep.subr.mxu0 0.0
        %416 = vmatpush1.msra.mxu0 0.0
        %417 = vmatprep.subr.mxu0 0.0
        %418 = vmatpush1.msra.mxu0 0.0
        %419 = vmatprep.subr.mxu0 0.0
        %420 = vmatpush1.msra.mxu0 0.0
        %421 = vmatprep.subr.mxu0 0.0
        %422 = vmatpush1.msra.mxu0 0.0
        %423 = vmatprep.subr.mxu0 0.0
        %424 = vmatpush1.msra.mxu0 0.0
        %425 = vmatprep.subr.mxu0 0.0
        %426 = vmatpush1.msra.mxu0 0.0
        %427 = vmatprep.subr.mxu0 0.0
        %428 = vmatpush1.msra.mxu0 0.0
        %429 = vmatprep.subr.mxu0 0.0
        %430 = vmatpush1.msra.mxu0 0.0
        %431 = vmatprep.subr.mxu0 0.0
        %432 = vmatpush1.msra.mxu0 0.0
        %433 = vmatprep.subr.mxu0 0.0
        %434 = vmatpush1.msra.mxu0 0.0
        %435 = vmatprep.subr.mxu0 0.0
        %436 = vmatpush1.msra.mxu0 0.0
        %437 = vmatprep.subr.mxu0 0.0
        %438 = vmatpush1.msra.mxu0 0.0
        %439 = vmatprep.subr.mxu0 0.0
        %440 = vmatpush1.msra.mxu0 0.0
        %441 = vmatprep.subr.mxu0 0.0
        %442 = vmatpush1.msra.mxu0 0.0
        %443 = vmatprep.subr.mxu0 0.0
        %444 = vmatpush1.msra.mxu0 0.0
        %445 = vmatprep.subr.mxu0 0.0
        %446 = vmatpush1.msra.mxu0 0.0
        %447 = vmatprep.subr.mxu0 0.0
        %448 = vmatpush1.msra.mxu0 0.0
        %449 = vmatprep.subr.mxu0 0.0
        %450 = vmatpush1.msra.mxu0 0.0
        %451 = vmatprep.subr.mxu0 0.0
        %452 = vmatpush1.msra.mxu0 0.0
        %453 = vmatprep.subr.mxu0 0.0
        %454 = vmatpush1.msra.mxu0 0.0
        %455 = vmatprep.subr.mxu0 0.0
        %456 = vmatpush1.msra.mxu0 0.0
        %457 = vmatprep.subr.mxu0 0.0
        %458 = vmatpush1.msra.mxu0 0.0
        %459 = vmatprep.subr.mxu0 0.0
        %460 = vmatpush1.msra.mxu0 0.0
        %461 = vmatprep.subr.mxu0 0.0
        %462 = vmatpush1.msra.mxu0 0.0
        %463 = vmatprep.subr.mxu0 0.0
        %464 = vmatpush1.msra.mxu0 0.0
        %465 = vmatprep.subr.mxu0 0.0
        %466 = vmatpush1.msra.mxu0 0.0
        %467 = vmatprep.mubr.f32.mxu0 0.0
        %468 = vmatmul.mubr.f32.gmra.mrb[0].mxu0 %v395
        %v469 = vpop.f32.mrb[0].mxu0
        %v470 = vadd.f32 %v393, %v469
        %v471 = vpop.f32.mrb[0].mxu0
        %472 = vmatprep.mubr.f32.mxu0 0.0
        %473 = vmatmul.mubr.f32.gmra.mrb[0].mxu0 %v398
        %v474 = vpop.f32.mrb[0].mxu0
        %v475 = vadd.f32 %v393, %v474
        %v476 = vpop.f32.mrb[0].mxu0
        %477 = vdwg.mxu0
        %v478 = vxor.u32 %v470, 2147483648
        %v479 = vxor.u32 %v475, 2147483648
        %v480 = vmul.f32 %v478, 1.442695
        %v481 = vpow.pop %v480
        %v482 = vmul.f32 %v479, 1.442695
        %v483 = vpow.pop %v482
        %v484 = vadd.f32 %v481, 1.0
        %v485 = vadd.f32 %v483, 1.0
        %v486 = vrcp.pop %v484
        %v487 = vmul.f32 1.0, %v486
        %v488 = vrcp.pop %v485
        %v489 = vmul.f32 1.0, %v488
        %vm490 = vcmask 130048
        %491 = vst.msk [vmem:[%s218] sm:$0xff] %vm490, %v487
        %492 = vst.msk [vmem:[%s218 + $0x8] sm:$0xff] %vm490, %v489
        %s493 = sand.u32 %s138, 1
        %s494 = scalar_lea.sflag [#allocation4], %s493
        %s495 = sand.u32 %s138, 1
        %s496 = smul.addr %s495, 16
        %s497 = scalar_lea.vmem [#allocation3], %s496
        // Predicated region
        $region41: #{tpu_custom_call.1} parent=39 // pred_check
          %p498 = pneg %p148
        $region42: #{tpu_custom_call.1} parent=39 // pred_check_branch
          %500 = sbr.rel (%p498) target = $region44
        $region43: #{tpu_custom_call.1} parent=39 // pred_region
          %s502 = ssub.s32 256, 256
          %503 = vsyncadd %s494, %s502
          %s504 = smul.addr %s20, 2
          %s505 = smul.addr %s504, 128
          %s506 = scalar_lea.hbm %s5, %s505
          %s507 = sshll.u32 %s497, 4
          %s508 = int_to_ptr.vmem [resolvable:$true] %s507
          %513 = dma.vmem_to_hbm [thread:$0]  %s508, 256, %s506, %s494, 128, 128, 8
        $region44: #{tpu_custom_call.1} parent=39 // pred_fallthru
          _
      $region40: #{tpu_custom_call.1} parent=5 // pred_fallthru
        _
      %p514 = scmp.le.s32.totalorder 2, %s15
      // Predicated region
      $region45: #{tpu_custom_call.1} parent=5 // pred_check
        %p515 = pneg %p514
      $region46: #{tpu_custom_call.1} parent=5 // pred_check_branch
        %517 = sbr.rel (%p515) target = $region48
      $region47: #{tpu_custom_call.1} parent=5 // pred_region
        %s518 = ssub.s32 %s15, 2
        // Predicated region
        $region49: #{tpu_custom_call.1} parent=47 // pred_check
          %p519 = pneg %p154
        $region50: #{tpu_custom_call.1} parent=47 // pred_check_branch
          %521 = sbr.rel (%p519) target = $region52
        $region51: #{tpu_custom_call.1} parent=47 // pred_region
          %s522 = sand.u32 %s139, 1
          %s523 = scalar_lea.sflag [#allocation4], %s522
          %s524 = sand.u32 %s139, 1
          %s525 = smul.addr %s524, 16
          %s526 = scalar_lea.vmem [#allocation3], %s525
          %527 = dma.done %s523, 256
        $region52: #{tpu_custom_call.1} parent=47 // pred_fallthru
          _
      $region48: #{tpu_custom_call.1} parent=5 // pred_fallthru
        _
    $region6: #{tpu_custom_call.1} parent=1 // loop_footer
      %s19 = sadd.s32 1, %s15
    $region7: #{tpu_custom_call.1} parent=1 // loop_footer_branch
      %14 = sbr.rel target = $region3
    $region8: #{tpu_custom_call.1} parent=1 // loop_exit
      _
    %528 = vsyncpa [#allocation4], 1
    %s529 = scalar_lea.sflag [#allocation4], 1
    %530 = vsyncpa %s529, 1

</llo_original>
